<compile_context>
chip_gen: v6e
topology: v6e:2x2x1
jax: 0.10.0
libtpu: 0.0.40
codegen_flags: <defaults>
</compile_context>

<pallas_src>
import jax
import jax.numpy as jnp
from jax.experimental import pallas as pl
from jax.experimental.pallas import tpu as pltpu

BN_EPS = 1e-5  # PyTorch BatchNorm1d default


def _round_up(n, m):
    return ((n + m - 1) // m) * m


# --------------------------------------------------------------------------- #
# Kernel: one row-tile of frames through pool -> proj -> fc1(+bn1) -> relu
#         -> fc2(+bn2) -> relu -> fc3.
# --------------------------------------------------------------------------- #
def encoder_kernel(
    x_ref,                       # (TM, C, HW)  f32
    wf_ref,                      # (C, F)       f32   synthetic feature proj
    w1_ref, s1_ref, b1_ref,      # (F, H1) bf16, (1, H1) f32, (1, H1) f32
    w2_ref, s2_ref, b2_ref,      # (H1, H2) bf16, (1, H2) f32, (1, H2) f32
    w3_ref, b3_ref,              # (H2, E) bf16, (1, E) f32
    out_ref,                     # (TM, E)      f32
):
    # ---- stand-in for frozen ResNet-152: global avg-pool + linear proj ----
    pooled = jnp.mean(x_ref[...], axis=-1)                     # (TM, C)  f32
    feat = jnp.dot(pooled, wf_ref[...],
                   preferred_element_type=jnp.float32)         # (TM, F)  f32

    # ---- fc1 -> bn1 (f32 scale/shift after accumulation) -> relu ----
    h = jnp.dot(feat.astype(jnp.bfloat16), w1_ref[...],
                preferred_element_type=jnp.float32)
    h = h * s1_ref[...] + b1_ref[...]
    h = jnp.maximum(h, 0.0)

    # ---- fc2 -> bn2 -> relu ----
    h = jnp.dot(h.astype(jnp.bfloat16), w2_ref[...],
                preferred_element_type=jnp.float32)
    h = h * s2_ref[...] + b2_ref[...]
    h = jnp.maximum(h, 0.0)

    # dropout: F.dropout(..., training=self.training); inference => identity.
    # TODO(synk): training-mode dropout (random mask) not reproduced.

    # ---- fc3 ----
    out = jnp.dot(h.astype(jnp.bfloat16), w3_ref[...],
                  preferred_element_type=jnp.float32) + b3_ref[...]
    # Output kept f32 (downstream LSTM reference is f32); cast to bf16 here
    # if the consumer accepts it to halve the writeback DMA.
    out_ref[...] = out.astype(out_ref.dtype)


# --------------------------------------------------------------------------- #
# Parameter preparation: BN folded into f32 per-column scale/shift pairs.
# --------------------------------------------------------------------------- #
def fold_params(params):
    (w_feat,
     w1, b1, g1, be1, m1, v1,
     w2, b2, g2, be2, m2, v2,
     w3, b3) = params

    s1 = g1 * jax.lax.rsqrt(v1 + BN_EPS)          # (1, H1) f32
    bb1 = (b1 - m1) * s1 + be1                    # fc1 bias folded through bn1
    s2 = g2 * jax.lax.rsqrt(v2 + BN_EPS)
    bb2 = (b2 - m2) * s2 + be2

    bf16 = jnp.bfloat16
    f32 = jnp.float32
    return (w_feat.astype(f32),
            w1.astype(bf16), s1.astype(f32), bb1.astype(f32),
            w2.astype(bf16), s2.astype(f32), bb2.astype(f32),
            w3.astype(bf16), b3.astype(f32))


# --------------------------------------------------------------------------- #
# Wrapper: row-tile over B*T; weights resident; no extra HBM passes over x.
# --------------------------------------------------------------------------- #
def res_cnn_encoder(x_3d, params, embed_dim, *, block_rows=1024):
    """x_3d: (B, T, C, H, W) float32 -> (B, T, embed_dim) float32."""
    B, T, C, H, W = x_3d.shape
    BT, HW = B * T, H * W

    wf, w1, s1, b1, w2, s2, b2, w3, b3 = fold_params(params)
    F_ = wf.shape[1]
    H1 = w1.shape[1]
    H2 = w2.shape[1]

    # Free (metadata-only) reshape: frames stay f32 in HBM, no cast/pad pass.
    x3 = x_3d.reshape(BT, C, HW)

    # Row tile: multiple of 8 sublanes (f32 blocks), capped by block_rows.
    tm = min(block_rows, _round_up(BT, 8))
    # Keep >= 2 grid steps when the row count allows it (v7x megacore).
    if pl.cdiv(BT, tm) < 2 and BT >= 16:
        tm = _round_up(pl.cdiv(BT, 2), 8)
    grid = (pl.cdiv(BT, tm),)   # ragged last tile handled by Pallas (rows
                                # are independent; OOB stores are masked)

    def _const(shape):
        return pl.BlockSpec(shape, lambda i: (0,) * len(shape))

    flops = BT * C * HW + 2 * BT * (C * F_ + F_ * H1 + H1 * H2 + H2 * embed_dim)
    bytes_accessed = (
        int(x3.size) * 4
        + sum(int(a.size) * a.dtype.itemsize
              for a in (wf, w1, s1, b1, w2, s2, b2, w3, b3))
        + BT * embed_dim * 4
    )

    out = pl.pallas_call(
        encoder_kernel,
        out_shape=jax.ShapeDtypeStruct((BT, embed_dim), jnp.float32),
        grid=grid,
        in_specs=[
            pl.BlockSpec((tm, C, HW), lambda i: (i, 0, 0)),   # x tile (pipelined)
            _const((C, F_)),                                  # resident weights
            _const((F_, H1)), _const((1, H1)), _const((1, H1)),
            _const((H1, H2)), _const((1, H2)), _const((1, H2)),
            _const((H2, embed_dim)), _const((1, embed_dim)),
        ],
        out_specs=pl.BlockSpec((tm, embed_dim), lambda i: (i, 0)),
        compiler_params=pltpu.CompilerParams(
            dimension_semantics=("parallel",),
            vmem_limit_bytes=48 * 1024 * 1024,   # headroom on v7x (64 MiB VMEM)
        ),
        cost_estimate=pl.CostEstimate(
            flops=flops, transcendentals=0, bytes_accessed=bytes_accessed),
    )(x3, wf, w1, s1, b1, w2, s2, b2, w3, b3)

    return out.reshape(B, T, embed_dim)


# --------------------------------------------------------------------------- #
# Deterministic synthetic parameters (shapes per ResCNNEncoder.__init__)
# --------------------------------------------------------------------------- #
def make_params(key, c, feat, h1, h2, embed):
    ks = jax.random.split(key, 8)

    def lin(k, fan_in, fan_out):
        scale = 1.0 / jnp.sqrt(jnp.float32(fan_in))
        kw, kb = jax.random.split(k)
        w = jax.random.uniform(kw, (fan_in, fan_out), jnp.float32, -scale, scale)
        b = jax.random.uniform(kb, (1, fan_out), jnp.float32, -scale, scale)
        return w, b

    w_feat = jax.random.normal(ks[0], (c, feat), jnp.float32) * 0.1
    w1, b1 = lin(ks[1], feat, h1)
    w2, b2 = lin(ks[2], h1, h2)
    w3, b3 = lin(ks[3], h2, embed)

    def bn(k, n):
        kg, kb, km, kv = jax.random.split(k, 4)
        gamma = 1.0 + 0.1 * jax.random.normal(kg, (1, n), jnp.float32)
        beta = 0.1 * jax.random.normal(kb, (1, n), jnp.float32)
        mean = 0.1 * jax.random.normal(km, (1, n), jnp.float32)
        var = jax.nn.softplus(jax.random.normal(kv, (1, n), jnp.float32)) + 0.5
        return gamma, beta, mean, var

    g1, be1, m1, v1 = bn(ks[4], h1)
    g2, be2, m2, v2 = bn(ks[5], h2)

    return (w_feat,
            w1, b1, g1, be1, m1, v1,
            w2, b2, g2, be2, m2, v2,
            w3, b3)


def reference_forward(x_3d, params):
    """Pure-JAX f32 reference with the original (un-folded) math."""
    (w_feat,
     w1, b1, g1, be1, m1, v1,
     w2, b2, g2, be2, m2, v2,
     w3, b3) = params
    B, T, C, H, W = x_3d.shape
    x = x_3d.reshape(B * T, C, H * W).astype(jnp.float32)
    pooled = jnp.mean(x, axis=-1)
    feat = pooled @ w_feat
    h = feat @ w1 + b1
    h = (h - m1) * jax.lax.rsqrt(v1 + BN_EPS) * g1 + be1
    h = jnp.maximum(h, 0.0)
    h = h @ w2 + b2
    h = (h - m2) * jax.lax.rsqrt(v2 + BN_EPS) * g2 + be2
    h = jnp.maximum(h, 0.0)
    out = h @ w3 + b3
    return out.reshape(B, T, -1)


if __name__ == "__main__":
    # Small shapes consistent with the module's forward:
    #   B=2 clips, T=4 frames, C=4 channels, 16x16 spatial.
    #   feature width / fc_hidden1 / fc_hidden2 / CNN_embed_dim = 128.
    B, T, C, H, W = 2, 4, 4, 16, 16
    FEAT, H1, H2, EMBED = 128, 128, 128, 128

    key = jax.random.PRNGKey(0)
    k_x, k_p = jax.random.split(key)

    x_3d = jax.random.normal(k_x, (B, T, C, H, W), jnp.float32)
    params = make_params(k_p, C, FEAT, H1, H2, EMBED)

    out = res_cnn_encoder(x_3d, params, EMBED)
    out = jax.block_until_ready(out)

    assert out.shape == (B, T, EMBED), out.shape
    assert out.dtype == jnp.float32

    ref = reference_forward(x_3d, params)
    err = float(jnp.max(jnp.abs(out - ref)))
    assert err < 1e-2, f"max abs err {err}"

    print("KERNEL_OK")
</pallas_src>

<mosaic_0001>
module attributes {stable_mosaic.version = 11 : i64} {
  func.func @encoder_kernel(%arg0: i32, %arg1: memref<8x4x256xf32, #tpu.memory_space<vmem>>, %arg2: memref<4x128xf32, #tpu.memory_space<vmem>>, %arg3: memref<128x128xbf16, #tpu.memory_space<vmem>>, %arg4: memref<1x128xf32, #tpu.memory_space<vmem>>, %arg5: memref<1x128xf32, #tpu.memory_space<vmem>>, %arg6: memref<128x128xbf16, #tpu.memory_space<vmem>>, %arg7: memref<1x128xf32, #tpu.memory_space<vmem>>, %arg8: memref<1x128xf32, #tpu.memory_space<vmem>>, %arg9: memref<128x128xbf16, #tpu.memory_space<vmem>>, %arg10: memref<1x128xf32, #tpu.memory_space<vmem>>, %arg11: memref<8x128xf32, #tpu.memory_space<vmem>>) attributes {dimension_semantics = [#tpu.dimension_semantics<parallel>], iteration_bounds = array<i64: 1>, scalar_prefetch = 0 : i64, scratch_operands = 0 : i64, tpu.core_type = #tpu.core_type<tc>, window_params = [{transform_indices = @transform_0, window_bounds = array<i64: 8, 4, 256>}, {pipeline_mode = #tpu.pipeline_mode<synchronous>, transform_indices = @transform_1, window_bounds = array<i64: 4, 128>}, {pipeline_mode = #tpu.pipeline_mode<synchronous>, transform_indices = @transform_2, window_bounds = array<i64: 128, 128>}, {pipeline_mode = #tpu.pipeline_mode<synchronous>, transform_indices = @transform_3, window_bounds = array<i64: 1, 128>}, {pipeline_mode = #tpu.pipeline_mode<synchronous>, transform_indices = @transform_4, window_bounds = array<i64: 1, 128>}, {pipeline_mode = #tpu.pipeline_mode<synchronous>, transform_indices = @transform_5, window_bounds = array<i64: 128, 128>}, {pipeline_mode = #tpu.pipeline_mode<synchronous>, transform_indices = @transform_6, window_bounds = array<i64: 1, 128>}, {pipeline_mode = #tpu.pipeline_mode<synchronous>, transform_indices = @transform_7, window_bounds = array<i64: 1, 128>}, {pipeline_mode = #tpu.pipeline_mode<synchronous>, transform_indices = @transform_8, window_bounds = array<i64: 128, 128>}, {pipeline_mode = #tpu.pipeline_mode<synchronous>, transform_indices = @transform_9, window_bounds = array<i64: 1, 128>}, {transform_indices = @transform_10, window_bounds = array<i64: 8, 128>}]} {
    %c0 = arith.constant 0 : index
    %c0_0 = arith.constant 0 : index
    %c0_1 = arith.constant 0 : index
    %0 = vector.load %arg1[%c0, %c0_0, %c0_1] : memref<8x4x256xf32, #tpu.memory_space<vmem>>, vector<8x4x256xf32>
    %cst = arith.constant dense<0.000000e+00> : vector<8x4xf32>
    %1 = vector.multi_reduction <add>, %0, %cst [2] : vector<8x4x256xf32> to vector<8x4xf32>
    %cst_2 = arith.constant 2.560000e+02 : f32
    %2 = vector.broadcast %cst_2 : f32 to vector<8x4xf32>
    %3 = arith.divf %1, %2 : vector<8x4xf32>
    %c0_3 = arith.constant 0 : index
    %c0_4 = arith.constant 0 : index
    %4 = vector.load %arg2[%c0_3, %c0_4] : memref<4x128xf32, #tpu.memory_space<vmem>>, vector<4x128xf32>
    %cst_5 = arith.constant dense<0.000000e+00> : vector<8x128xf32>
    %5 = tpu.matmul %3, %4, %cst_5 {dimension_numbers = #tpu.dot_dimension_numbers<[1], [0], [0], [1], [0, 0, 1, 1], [], []>} : vector<8x4xf32>, vector<4x128xf32>, vector<8x128xf32> -> vector<8x128xf32>
    %6 = arith.truncf %5 : vector<8x128xf32> to vector<8x128xbf16>
    %c0_6 = arith.constant 0 : index
    %c0_7 = arith.constant 0 : index
    %7 = vector.load %arg3[%c0_6, %c0_7] : memref<128x128xbf16, #tpu.memory_space<vmem>>, vector<128x128xbf16>
    %cst_8 = arith.constant dense<0.000000e+00> : vector<8x128xf32>
    %8 = tpu.matmul %6, %7, %cst_8 {dimension_numbers = #tpu.dot_dimension_numbers<[1], [0], [0], [1], [0, 0, 1, 1], [], []>} : vector<8x128xbf16>, vector<128x128xbf16>, vector<8x128xf32> -> vector<8x128xf32>
    %c0_9 = arith.constant 0 : index
    %c0_10 = arith.constant 0 : index
    %9 = vector.load %arg4[%c0_9, %c0_10] : memref<1x128xf32, #tpu.memory_space<vmem>>, vector<1x128xf32>
    %10 = vector.broadcast %9 : vector<1x128xf32> to vector<8x128xf32>
    %11 = arith.mulf %8, %10 : vector<8x128xf32>
    %c0_11 = arith.constant 0 : index
    %c0_12 = arith.constant 0 : index
    %12 = vector.load %arg5[%c0_11, %c0_12] : memref<1x128xf32, #tpu.memory_space<vmem>>, vector<1x128xf32>
    %13 = vector.broadcast %12 : vector<1x128xf32> to vector<8x128xf32>
    %14 = arith.addf %11, %13 : vector<8x128xf32>
    %cst_13 = arith.constant 0.000000e+00 : f32
    %15 = vector.broadcast %cst_13 : f32 to vector<8x128xf32>
    %16 = arith.maximumf %14, %15 : vector<8x128xf32>
    %17 = arith.truncf %16 : vector<8x128xf32> to vector<8x128xbf16>
    %c0_14 = arith.constant 0 : index
    %c0_15 = arith.constant 0 : index
    %18 = vector.load %arg6[%c0_14, %c0_15] : memref<128x128xbf16, #tpu.memory_space<vmem>>, vector<128x128xbf16>
    %cst_16 = arith.constant dense<0.000000e+00> : vector<8x128xf32>
    %19 = tpu.matmul %17, %18, %cst_16 {dimension_numbers = #tpu.dot_dimension_numbers<[1], [0], [0], [1], [0, 0, 1, 1], [], []>} : vector<8x128xbf16>, vector<128x128xbf16>, vector<8x128xf32> -> vector<8x128xf32>
    %c0_17 = arith.constant 0 : index
    %c0_18 = arith.constant 0 : index
    %20 = vector.load %arg7[%c0_17, %c0_18] : memref<1x128xf32, #tpu.memory_space<vmem>>, vector<1x128xf32>
    %21 = vector.broadcast %20 : vector<1x128xf32> to vector<8x128xf32>
    %22 = arith.mulf %19, %21 : vector<8x128xf32>
    %c0_19 = arith.constant 0 : index
    %c0_20 = arith.constant 0 : index
    %23 = vector.load %arg8[%c0_19, %c0_20] : memref<1x128xf32, #tpu.memory_space<vmem>>, vector<1x128xf32>
    %24 = vector.broadcast %23 : vector<1x128xf32> to vector<8x128xf32>
    %25 = arith.addf %22, %24 : vector<8x128xf32>
    %cst_21 = arith.constant 0.000000e+00 : f32
    %26 = vector.broadcast %cst_21 : f32 to vector<8x128xf32>
    %27 = arith.maximumf %25, %26 : vector<8x128xf32>
    %28 = arith.truncf %27 : vector<8x128xf32> to vector<8x128xbf16>
    %c0_22 = arith.constant 0 : index
    %c0_23 = arith.constant 0 : index
    %29 = vector.load %arg9[%c0_22, %c0_23] : memref<128x128xbf16, #tpu.memory_space<vmem>>, vector<128x128xbf16>
    %cst_24 = arith.constant dense<0.000000e+00> : vector<8x128xf32>
    %30 = tpu.matmul %28, %29, %cst_24 {dimension_numbers = #tpu.dot_dimension_numbers<[1], [0], [0], [1], [0, 0, 1, 1], [], []>} : vector<8x128xbf16>, vector<128x128xbf16>, vector<8x128xf32> -> vector<8x128xf32>
    %c0_25 = arith.constant 0 : index
    %c0_26 = arith.constant 0 : index
    %31 = vector.load %arg10[%c0_25, %c0_26] : memref<1x128xf32, #tpu.memory_space<vmem>>, vector<1x128xf32>
    %32 = vector.broadcast %31 : vector<1x128xf32> to vector<8x128xf32>
    %33 = arith.addf %30, %32 : vector<8x128xf32>
    %c0_27 = arith.constant 0 : index
    %c0_28 = arith.constant 0 : index
    %34 = vector.load %arg11[%c0_27, %c0_28] : memref<8x128xf32, #tpu.memory_space<vmem>>, vector<8x128xf32>
    tpu.vector_store %arg11[%c0_27, %c0_28], %33 {strides = array<i32>} : memref<8x128xf32, #tpu.memory_space<vmem>>, vector<8x128xf32>,
    return
  }
  func.func @transform_0(%arg0: i32) -> (i32, i32, i32) {
    %c0_i32 = arith.constant 0 : i32
    %c0_i32_0 = arith.constant 0 : i32
    %c0_i32_1 = arith.constant 0 : i32
    return %arg0, %c0_i32, %c0_i32_0 : i32, i32, i32
  }
  func.func @transform_1(%arg0: i32) -> (i32, i32) {
    %c0_i32 = arith.constant 0 : i32
    %c0_i32_0 = arith.constant 0 : i32
    %c0_i32_1 = arith.constant 0 : i32
    return %c0_i32, %c0_i32_0 : i32, i32
  }
  func.func @transform_2(%arg0: i32) -> (i32, i32) {
    %c0_i32 = arith.constant 0 : i32
    %c0_i32_0 = arith.constant 0 : i32
    %c0_i32_1 = arith.constant 0 : i32
    return %c0_i32, %c0_i32_0 : i32, i32
  }
  func.func @transform_3(%arg0: i32) -> (i32, i32) {
    %c0_i32 = arith.constant 0 : i32
    %c0_i32_0 = arith.constant 0 : i32
    %c0_i32_1 = arith.constant 0 : i32
    return %c0_i32, %c0_i32_0 : i32, i32
  }
  func.func @transform_4(%arg0: i32) -> (i32, i32) {
    %c0_i32 = arith.constant 0 : i32
    %c0_i32_0 = arith.constant 0 : i32
    %c0_i32_1 = arith.constant 0 : i32
    return %c0_i32, %c0_i32_0 : i32, i32
  }
  func.func @transform_5(%arg0: i32) -> (i32, i32) {
    %c0_i32 = arith.constant 0 : i32
    %c0_i32_0 = arith.constant 0 : i32
    %c0_i32_1 = arith.constant 0 : i32
    return %c0_i32, %c0_i32_0 : i32, i32
  }
  func.func @transform_6(%arg0: i32) -> (i32, i32) {
    %c0_i32 = arith.constant 0 : i32
    %c0_i32_0 = arith.constant 0 : i32
    %c0_i32_1 = arith.constant 0 : i32
    return %c0_i32, %c0_i32_0 : i32, i32
  }
  func.func @transform_7(%arg0: i32) -> (i32, i32) {
    %c0_i32 = arith.constant 0 : i32
    %c0_i32_0 = arith.constant 0 : i32
    %c0_i32_1 = arith.constant 0 : i32
    return %c0_i32, %c0_i32_0 : i32, i32
  }
  func.func @transform_8(%arg0: i32) -> (i32, i32) {
    %c0_i32 = arith.constant 0 : i32
    %c0_i32_0 = arith.constant 0 : i32
    %c0_i32_1 = arith.constant 0 : i32
    return %c0_i32, %c0_i32_0 : i32, i32
  }
  func.func @transform_9(%arg0: i32) -> (i32, i32) {
    %c0_i32 = arith.constant 0 : i32
    %c0_i32_0 = arith.constant 0 : i32
    %c0_i32_1 = arith.constant 0 : i32
    return %c0_i32, %c0_i32_0 : i32, i32
  }
  func.func @transform_10(%arg0: i32) -> (i32, i32) {
    %c0_i32 = arith.constant 0 : i32
    %c0_i32_0 = arith.constant 0 : i32
    return %arg0, %c0_i32 : i32, i32
  }
}

</mosaic_0001>

<llo_original>
// kernel: tpu_custom_call.1
$region0: #{tpu_custom_call.1}
  #allocation0 [shape = 'u32[]', space=smem, size = 0x4, offset = 0x4, fixed_abs, tag = 'smem constant byte address 0x4 - core index']
  #allocation1 [shape = 'u32[144,128]{1,0:T(1,128)}', space=vmem, size = 0x12000, scoped, tag = 'internal scratch']
  %s0 = inlined_call_operand.hbm [shape: f32[8,4,256], index: 0, kind: input, shape index: {}]
  %s1 = inlined_call_operand.hbm [shape: f32[4,128], index: 1, kind: input, shape index: {}]
  %s2 = inlined_call_operand.hbm [shape: bf16[128,128], index: 2, kind: input, shape index: {}]
  %s3 = inlined_call_operand.vmem [shape: f32[1,128], index: 3, kind: input, shape index: {}]
  %s4 = inlined_call_operand.vmem [shape: f32[1,128], index: 4, kind: input, shape index: {}]
  %s5 = inlined_call_operand.hbm [shape: bf16[128,128], index: 5, kind: input, shape index: {}]
  %s6 = inlined_call_operand.vmem [shape: f32[1,128], index: 6, kind: input, shape index: {}]
  %s7 = inlined_call_operand.vmem [shape: f32[1,128], index: 7, kind: input, shape index: {}]
  %s8 = inlined_call_operand.hbm [shape: bf16[128,128], index: 8, kind: input, shape index: {}]
  %s9 = inlined_call_operand.vmem [shape: f32[1,128], index: 9, kind: input, shape index: {}]
  %s10 = inlined_call_operand.hbm [shape: f32[8,128], index: 10, kind: output, shape index: {}]
  %s11 = sld [smem:[#allocation0]]
  $region70: #{tpu_custom_call.1} parent=0
    _
  %s13 = ssub.s32 1, %s11
  %s14 = scalar_select 0, %s13, %s11
  $region1: #{tpu_custom_call.1} parent=0
    #allocation2 [shape = 'u8[32768]{0}', space=vmem, size = 0x8000, scoped, tag = 'input window, operand 0, single buffered']
    #allocation3 [shape = 's32[1]{0}', space=sflag, size = 0x4, scoped, tag = 'scoped memory for tpu_custom_call.1']
    #allocation4 [shape = 's32[1]{0}', space=sflag, size = 0x4, scoped, tag = 'scoped memory for tpu_custom_call.1']
    #allocation5 [shape = 'u8[2048]{0}', space=vmem, size = 0x800, scoped, tag = 'input window, operand 1, single buffered']
    #allocation6 [shape = 's32[1]{0}', space=sflag, size = 0x4, scoped, tag = 'scoped memory for tpu_custom_call.1']
    #allocation7 [shape = 'u8[32768]{0}', space=vmem, size = 0x8000, scoped, tag = 'input window, operand 2, single buffered']
    #allocation8 [shape = 'u8[32768]{0}', space=vmem, size = 0x8000, scoped, tag = 'input window, operand 5, single buffered']
    #allocation9 [shape = 's32[1]{0}', space=sflag, size = 0x4, scoped, tag = 'scoped memory for tpu_custom_call.1']
    #allocation10 [shape = 'u8[32768]{0}', space=vmem, size = 0x8000, scoped, tag = 'input window, operand 8, single buffered']
    #allocation11 [shape = 'u8[4096]{0}', space=vmem, size = 0x1000, scoped, tag = 'output window, operand 0, single buffered']
    %15 = vsyncpa [#allocation3], 0
    %16 = vsyncpa [#allocation6], 0
    %17 = vsyncpa [#allocation9], 0
    %18 = vsyncpa [#allocation4], 0
    // Predicated region
    $region2: #{tpu_custom_call.1} parent=1 // pred_check
      _
    $region3: #{tpu_custom_call.1} parent=1 // pred_check_branch
      %20 = sbr.rel (0) target = $region5
    $region4: #{tpu_custom_call.1} parent=1 // pred_region
      %s22 = ssub.s32 1024, 1024
      %23 = vsyncadd [#allocation3], %s22
      %s24 = sshll.u32 [#allocation2], 4
      %s25 = int_to_ptr.vmem [resolvable:$true] %s24
      %30 = dma.hbm_to_vmem [thread:$0]  %s0, 1024, %s25, [#allocation3], 128, 128, 8
    $region5: #{tpu_custom_call.1} parent=1 // pred_fallthru
      _
    // Predicated region
    $region6: #{tpu_custom_call.1} parent=1 // pred_check
      _
    $region7: #{tpu_custom_call.1} parent=1 // pred_check_branch
      %32 = sbr.rel (0) target = $region9
    $region8: #{tpu_custom_call.1} parent=1 // pred_region
      %s34 = ssub.s32 64, 64
      %35 = vsyncadd [#allocation6], %s34
      %s37 = sshll.u32 [#allocation5], 4
      %s38 = int_to_ptr.vmem [resolvable:$true] %s37
      %40 = dma.hbm_to_vmem [thread:$0]  %s1, 64, %s38, [#allocation6]
    $region9: #{tpu_custom_call.1} parent=1 // pred_fallthru
      _
    // Predicated region
    $region10: #{tpu_custom_call.1} parent=1 // pred_check
      _
    $region11: #{tpu_custom_call.1} parent=1 // pred_check_branch
      %42 = sbr.rel (0) target = $region13
    $region12: #{tpu_custom_call.1} parent=1 // pred_region
      %s44 = ssub.s32 1024, 1024
      %45 = vsyncadd [#allocation6], %s44
      %s46 = sshll.u32 [#allocation7], 4
      %s47 = int_to_ptr.vmem [resolvable:$true] %s46
      %52 = dma.hbm_to_vmem [thread:$0]  %s2, 1024, %s47, [#allocation6], 64, 64, 4
    $region13: #{tpu_custom_call.1} parent=1 // pred_fallthru
      _
    // Predicated region
    $region14: #{tpu_custom_call.1} parent=1 // pred_check
      _
    $region15: #{tpu_custom_call.1} parent=1 // pred_check_branch
      %54 = sbr.rel (0) target = $region17
    $region16: #{tpu_custom_call.1} parent=1 // pred_region
      _
    $region17: #{tpu_custom_call.1} parent=1 // pred_fallthru
      _
    // Predicated region
    $region18: #{tpu_custom_call.1} parent=1 // pred_check
      _
    $region19: #{tpu_custom_call.1} parent=1 // pred_check_branch
      %56 = sbr.rel (0) target = $region21
    $region20: #{tpu_custom_call.1} parent=1 // pred_region
      _
    $region21: #{tpu_custom_call.1} parent=1 // pred_fallthru
      _
    // Predicated region
    $region22: #{tpu_custom_call.1} parent=1 // pred_check
      _
    $region23: #{tpu_custom_call.1} parent=1 // pred_check_branch
      %58 = sbr.rel (0) target = $region25
    $region24: #{tpu_custom_call.1} parent=1 // pred_region
      %s60 = ssub.s32 1024, 1024
      %61 = vsyncadd [#allocation9], %s60
      %s62 = sshll.u32 [#allocation8], 4
      %s63 = int_to_ptr.vmem [resolvable:$true] %s62
      %68 = dma.hbm_to_vmem [thread:$0]  %s5, 1024, %s63, [#allocation9], 64, 64, 4
    $region25: #{tpu_custom_call.1} parent=1 // pred_fallthru
      _
    // Predicated region
    $region26: #{tpu_custom_call.1} parent=1 // pred_check
      _
    $region27: #{tpu_custom_call.1} parent=1 // pred_check_branch
      %70 = sbr.rel (0) target = $region29
    $region28: #{tpu_custom_call.1} parent=1 // pred_region
      _
    $region29: #{tpu_custom_call.1} parent=1 // pred_fallthru
      _
    // Predicated region
    $region30: #{tpu_custom_call.1} parent=1 // pred_check
      _
    $region31: #{tpu_custom_call.1} parent=1 // pred_check_branch
      %72 = sbr.rel (0) target = $region33
    $region32: #{tpu_custom_call.1} parent=1 // pred_region
      _
    $region33: #{tpu_custom_call.1} parent=1 // pred_fallthru
      _
    // Predicated region
    $region34: #{tpu_custom_call.1} parent=1 // pred_check
      _
    $region35: #{tpu_custom_call.1} parent=1 // pred_check_branch
      %74 = sbr.rel (0) target = $region37
    $region36: #{tpu_custom_call.1} parent=1 // pred_region
      %s76 = ssub.s32 1024, 1024
      %77 = vsyncadd [#allocation9], %s76
      %s78 = sshll.u32 [#allocation10], 4
      %s79 = int_to_ptr.vmem [resolvable:$true] %s78
      %84 = dma.hbm_to_vmem [thread:$0]  %s8, 1024, %s79, [#allocation9], 64, 64, 4
    $region37: #{tpu_custom_call.1} parent=1 // pred_fallthru
      _
    // Predicated region
    $region38: #{tpu_custom_call.1} parent=1 // pred_check
      _
    $region39: #{tpu_custom_call.1} parent=1 // pred_check_branch
      %86 = sbr.rel (0) target = $region41
    $region40: #{tpu_custom_call.1} parent=1 // pred_region
      _
    $region41: #{tpu_custom_call.1} parent=1 // pred_fallthru
      _
    // Predicated region
    $region42: #{tpu_custom_call.1} parent=1 // pred_check
      _
    $region43: #{tpu_custom_call.1} parent=1 // pred_check_branch
      %88 = sbr.rel (0) target = $region45
    $region44: #{tpu_custom_call.1} parent=1 // pred_region
      %89 = dma.done [#allocation3], 1024
    $region45: #{tpu_custom_call.1} parent=1 // pred_fallthru
      _
    // Predicated region
    $region46: #{tpu_custom_call.1} parent=1 // pred_check
      _
    $region47: #{tpu_custom_call.1} parent=1 // pred_check_branch
      %91 = sbr.rel (0) target = $region49
    $region48: #{tpu_custom_call.1} parent=1 // pred_region
      %92 = dma.done [#allocation6], 64
    $region49: #{tpu_custom_call.1} parent=1 // pred_fallthru
      _
    // Predicated region
    $region50: #{tpu_custom_call.1} parent=1 // pred_check
      _
    $region51: #{tpu_custom_call.1} parent=1 // pred_check_branch
      %94 = sbr.rel (0) target = $region53
    $region52: #{tpu_custom_call.1} parent=1 // pred_region
      %95 = dma.done [#allocation6], 1024
    $region53: #{tpu_custom_call.1} parent=1 // pred_fallthru
      _
    // Predicated region
    $region54: #{tpu_custom_call.1} parent=1 // pred_check
      _
    $region55: #{tpu_custom_call.1} parent=1 // pred_check_branch
      %97 = sbr.rel (0) target = $region57
    $region56: #{tpu_custom_call.1} parent=1 // pred_region
      %98 = dma.done [#allocation9], 1024
    $region57: #{tpu_custom_call.1} parent=1 // pred_fallthru
      _
    // Predicated region
    $region58: #{tpu_custom_call.1} parent=1 // pred_check
      _
    $region59: #{tpu_custom_call.1} parent=1 // pred_check_branch
      %100 = sbr.rel (0) target = $region61
    $region60: #{tpu_custom_call.1} parent=1 // pred_region
      %101 = dma.done [#allocation9], 1024
    $region61: #{tpu_custom_call.1} parent=1 // pred_fallthru
      _
    %v103 = vld [vmem:[#allocation2] sm:$0xff]
    %v104 = vld [vmem:[#allocation2 + $0x8] sm:$0xff]
    %v105 = vld [vmem:[#allocation2 + $0x10] sm:$0xff]
    %v106 = vld [vmem:[#allocation2 + $0x18] sm:$0xff]
    %v107 = vld [vmem:[#allocation2 + $0x20] sm:$0xff]
    %v108 = vld [vmem:[#allocation2 + $0x28] sm:$0xff]
    %v109 = vld [vmem:[#allocation2 + $0x30] sm:$0xff]
    %v110 = vld [vmem:[#allocation2 + $0x38] sm:$0xff]
    %v119 = vcombine.high %v103, %v103
    %v120 = vcombine.high %v104, %v104
    %v121 = vcombine.high %v105, %v105
    %v122 = vcombine.high %v106, %v106
    %v123 = vcombine.high %v107, %v107
    %v124 = vcombine.high %v108, %v108
    %v125 = vcombine.high %v109, %v109
    %v126 = vcombine.high %v110, %v110
    %vm135 = vcmask 1043456
    %v136 = vsel %vm135, %v103, 0.0
    %v137 = vsel %vm135, %v119, 0.0
    %v138 = vadd.f32 %v136, %v137
    %139 = vadd.xlane.f32.xlu0 %v138
    %v140 = vpop.xlane.xlu0 %139
    %v141 = vsel %vm135, %v104, 0.0
    %v142 = vsel %vm135, %v120, 0.0
    %v143 = vadd.f32 %v141, %v142
    %144 = vadd.xlane.f32.xlu0 %v143
    %v145 = vpop.xlane.xlu0 %144
    %v146 = vsel %vm135, %v105, 0.0
    %v147 = vsel %vm135, %v121, 0.0
    %v148 = vadd.f32 %v146, %v147
    %149 = vadd.xlane.f32.xlu0 %v148
    %v150 = vpop.xlane.xlu0 %149
    %v151 = vsel %vm135, %v106, 0.0
    %v152 = vsel %vm135, %v122, 0.0
    %v153 = vadd.f32 %v151, %v152
    %154 = vadd.xlane.f32.xlu0 %v153
    %v155 = vpop.xlane.xlu0 %154
    %v156 = vsel %vm135, %v107, 0.0
    %v157 = vsel %vm135, %v123, 0.0
    %v158 = vadd.f32 %v156, %v157
    %159 = vadd.xlane.f32.xlu0 %v158
    %v160 = vpop.xlane.xlu0 %159
    %v161 = vsel %vm135, %v108, 0.0
    %v162 = vsel %vm135, %v124, 0.0
    %v163 = vadd.f32 %v161, %v162
    %164 = vadd.xlane.f32.xlu0 %v163
    %v165 = vpop.xlane.xlu0 %164
    %v166 = vsel %vm135, %v109, 0.0
    %v167 = vsel %vm135, %v125, 0.0
    %v168 = vadd.f32 %v166, %v167
    %169 = vadd.xlane.f32.xlu0 %v168
    %v170 = vpop.xlane.xlu0 %169
    %v171 = vsel %vm135, %v110, 0.0
    %v172 = vsel %vm135, %v126, 0.0
    %v173 = vadd.f32 %v171, %v172
    %174 = vadd.xlane.f32.xlu0 %v173
    %v175 = vpop.xlane.xlu0 %174
    %v176 = vrcp.pop 256.0
    %v177 = vmul.f32 %v140, %v176
    %v178 = vmul.f32 %v145, %v176
    %v179 = vmul.f32 %v150, %v176
    %v180 = vmul.f32 %v155, %v176
    %v181 = vmul.f32 %v160, %v176
    %v182 = vmul.f32 %v165, %v176
    %v183 = vmul.f32 %v170, %v176
    %v184 = vmul.f32 %v175, %v176
    %v185 = vld [vmem:[#allocation5] sm:$0xf]
    %v194 = vlaneseq
    %v195 = vand.u32 %v194, 127
    %v196 = vlaneseq
    %v197 = vshrl.u32 %v196, 7
    %v198 = vsub.s32 %v195, %v197
    %v199 = vrot.slane %v177, %v198
    %v200 = vlaneseq
    %v201 = vshrl.u32 %v200, 7
    %v202 = vsub.s32 %v195, %v201
    %v203 = vrot.slane %v178, %v202
    %v204 = vlaneseq
    %v205 = vshrl.u32 %v204, 7
    %v206 = vsub.s32 %v195, %v205
    %v207 = vrot.slane %v179, %v206
    %v208 = vlaneseq
    %v209 = vshrl.u32 %v208, 7
    %v210 = vsub.s32 %v195, %v209
    %v211 = vrot.slane %v180, %v210
    %v212 = vlaneseq
    %v213 = vshrl.u32 %v212, 7
    %v214 = vsub.s32 %v195, %v213
    %v215 = vrot.slane %v181, %v214
    %v216 = vlaneseq
    %v217 = vshrl.u32 %v216, 7
    %v218 = vsub.s32 %v195, %v217
    %v219 = vrot.slane %v182, %v218
    %v220 = vlaneseq
    %v221 = vshrl.u32 %v220, 7
    %v222 = vsub.s32 %v195, %v221
    %v223 = vrot.slane %v183, %v222
    %v224 = vlaneseq
    %v225 = vshrl.u32 %v224, 7
    %v226 = vsub.s32 %v195, %v225
    %v227 = vrot.slane %v184, %v226
    %vm228 = vcmask 1041409
    %v229 = vsel %vm228, %v203, %v199
    %vm230 = vcmask 1042434
    %v231 = vsel %vm230, %v207, %v229
    %vm232 = vcmask 1043459
    %v233 = vsel %vm232, %v211, %v231
    %vm234 = vcmask 1044484
    %v235 = vsel %vm234, %v215, %v233
    %vm236 = vcmask 1045509
    %v237 = vsel %vm236, %v219, %v235
    %vm238 = vcmask 1046534
    %v239 = vsel %vm238, %v223, %v237
    %vm240 = vcmask 1047559
    %v241 = vsel %vm240, %v227, %v239
    %vm242 = vcmask 31744
    %v243 = vsel %vm242, %v241, 0
    %v246 = vsel %vm135, %v185, 0
    %248 = vmatprep.subr.mxu0 0.0
    %249 = vmatpush1.msra.mxu0 0.0
    %250 = vmatprep.subr.mxu0 0.0
    %251 = vmatpush1.msra.mxu0 0.0
    %252 = vmatprep.subr.mxu0 0.0
    %253 = vmatpush1.msra.mxu0 0.0
    %254 = vmatprep.subr.mxu0 0.0
    %255 = vmatpush1.msra.mxu0 0.0
    %256 = vmatprep.subr.mxu0 0.0
    %257 = vmatpush1.msra.mxu0 0.0
    %258 = vmatprep.subr.mxu0 0.0
    %259 = vmatpush1.msra.mxu0 0.0
    %260 = vmatprep.subr.mxu0 0.0
    %261 = vmatpush1.msra.mxu0 0.0
    %262 = vmatprep.subr.mxu0 0.0
    %263 = vmatpush1.msra.mxu0 0.0
    %264 = vmatprep.subr.mxu0 0.0
    %265 = vmatpush1.msra.mxu0 0.0
    %266 = vmatprep.subr.mxu0 0.0
    %267 = vmatpush1.msra.mxu0 0.0
    %268 = vmatprep.subr.mxu0 0.0
    %269 = vmatpush1.msra.mxu0 0.0
    %270 = vmatprep.subr.mxu0 0.0
    %271 = vmatpush1.msra.mxu0 0.0
    %272 = vmatprep.subr.mxu0 0.0
    %273 = vmatpush1.msra.mxu0 0.0
    %274 = vmatprep.subr.mxu0 0.0
    %275 = vmatpush1.msra.mxu0 0.0
    %276 = vmatprep.subr.mxu0 0.0
    %277 = vmatpush1.msra.mxu0 0.0
    %278 = vmatprep.subr.mxu0 0.0
    %279 = vmatpush1.msra.mxu0 %v246
    %280 = vmatprep.subr.mxu0 0.0
    %281 = vmatpush2.msra.mxu0 0.0
    %282 = vmatprep.subr.mxu0 0.0
    %283 = vmatpush2.msra.mxu0 0.0
    %284 = vmatprep.subr.mxu0 0.0
    %285 = vmatpush2.msra.mxu0 0.0
    %286 = vmatprep.subr.mxu0 0.0
    %287 = vmatpush2.msra.mxu0 0.0
    %288 = vmatprep.subr.mxu0 0.0
    %289 = vmatpush2.msra.mxu0 0.0
    %290 = vmatprep.subr.mxu0 0.0
    %291 = vmatpush2.msra.mxu0 0.0
    %292 = vmatprep.subr.mxu0 0.0
    %293 = vmatpush2.msra.mxu0 0.0
    %294 = vmatprep.subr.mxu0 0.0
    %295 = vmatpush2.msra.mxu0 0.0
    %296 = vmatprep.subr.mxu0 0.0
    %297 = vmatpush2.msra.mxu0 0.0
    %298 = vmatprep.subr.mxu0 0.0
    %299 = vmatpush2.msra.mxu0 0.0
    %300 = vmatprep.subr.mxu0 0.0
    %301 = vmatpush2.msra.mxu0 0.0
    %302 = vmatprep.subr.mxu0 0.0
    %303 = vmatpush2.msra.mxu0 0.0
    %304 = vmatprep.subr.mxu0 0.0
    %305 = vmatpush2.msra.mxu0 0.0
    %306 = vmatprep.subr.mxu0 0.0
    %307 = vmatpush2.msra.mxu0 0.0
    %308 = vmatprep.subr.mxu0 0.0
    %309 = vmatpush2.msra.mxu0 0.0
    %310 = vmatprep.subr.mxu0 0.0
    %311 = vmatpush2.msra.mxu0 0.0
    %312 = vmatprep.mubr.f32.mxu0 0.0
    %313 = vmatmul.mubr.f32.gmra.mxu0 %v243
    %v314 = vpop.f32.mrf.mxu0
    %v315 = vadd.f32 0.0, %v314
    %v316 = vpop.f32.mrf.mxu0
    %317 = vdwg.mxu0
    %v318 = vpack.c.bf16 %v315, %v315
    %v319 = vld [vmem:[#allocation7] sm:$0xf]
    %v320 = vld [vmem:[#allocation7 + $0x4] sm:$0xf]
    %v321 = vld [vmem:[#allocation7 + $0x8] sm:$0xf]
    %v322 = vld [vmem:[#allocation7 + $0xc] sm:$0xf]
    %v323 = vld [vmem:[#allocation7 + $0x10] sm:$0xf]
    %v324 = vld [vmem:[#allocation7 + $0x14] sm:$0xf]
    %v325 = vld [vmem:[#allocation7 + $0x18] sm:$0xf]
    %v326 = vld [vmem:[#allocation7 + $0x1c] sm:$0xf]
    %v327 = vld [vmem:[#allocation7 + $0x20] sm:$0xf]
    %v328 = vld [vmem:[#allocation7 + $0x24] sm:$0xf]
    %v329 = vld [vmem:[#allocation7 + $0x28] sm:$0xf]
    %v330 = vld [vmem:[#allocation7 + $0x2c] sm:$0xf]
    %v331 = vld [vmem:[#allocation7 + $0x30] sm:$0xf]
    %v332 = vld [vmem:[#allocation7 + $0x34] sm:$0xf]
    %v333 = vld [vmem:[#allocation7 + $0x38] sm:$0xf]
    %v334 = vld [vmem:[#allocation7 + $0x3c] sm:$0xf]
    %v351 = vunpack.c.l.b16 %v319
    %v352 = vunpack.c.l.b16 %v320
    %v353 = vunpack.c.l.b16 %v321
    %v354 = vunpack.c.l.b16 %v322
    %v355 = vunpack.c.l.b16 %v323
    %v356 = vunpack.c.l.b16 %v324
    %v357 = vunpack.c.l.b16 %v325
    %v358 = vunpack.c.l.b16 %v326
    %v359 = vunpack.c.l.b16 %v327
    %v360 = vunpack.c.l.b16 %v328
    %v361 = vunpack.c.l.b16 %v329
    %v362 = vunpack.c.l.b16 %v330
    %v363 = vunpack.c.l.b16 %v331
    %v364 = vunpack.c.l.b16 %v332
    %v365 = vunpack.c.l.b16 %v333
    %v366 = vunpack.c.l.b16 %v334
    %v367 = vpack.c.b16 %v352, %v351
    %v368 = vpack.c.b16 %v354, %v353
    %v369 = vpack.c.b16 %v356, %v355
    %v370 = vpack.c.b16 %v358, %v357
    %v371 = vpack.c.b16 %v360, %v359
    %v372 = vpack.c.b16 %v362, %v361
    %v373 = vpack.c.b16 %v364, %v363
    %v374 = vpack.c.b16 %v366, %v365
    %383 = vmatprep.subr.bf16.mxu0 0
    %384 = vmatpush1.bf16.msra.mxu0 %v374
    %385 = vmatprep.subr.bf16.mxu0 0
    %386 = vmatpush1.bf16.msra.mxu0 %v373
    %387 = vmatprep.subr.bf16.mxu0 0
    %388 = vmatpush1.bf16.msra.mxu0 %v372
    %389 = vmatprep.subr.bf16.mxu0 0
    %390 = vmatpush1.bf16.msra.mxu0 %v371
    %391 = vmatprep.subr.bf16.mxu0 0
    %392 = vmatpush1.bf16.msra.mxu0 %v370
    %393 = vmatprep.subr.bf16.mxu0 0
    %394 = vmatpush1.bf16.msra.mxu0 %v369
    %395 = vmatprep.subr.bf16.mxu0 0
    %396 = vmatpush1.bf16.msra.mxu0 %v368
    %397 = vmatprep.subr.bf16.mxu0 0
    %398 = vmatpush1.bf16.msra.mxu0 %v367
    %399 = vmatprep.subr.bf16.mxu0 0
    %400 = vmatpush2.bf16.msra.mxu0 0
    %401 = vmatprep.subr.bf16.mxu0 0
    %402 = vmatpush2.bf16.msra.mxu0 0
    %403 = vmatprep.subr.bf16.mxu0 0
    %404 = vmatpush2.bf16.msra.mxu0 0
    %405 = vmatprep.subr.bf16.mxu0 0
    %406 = vmatpush2.bf16.msra.mxu0 0
    %407 = vmatprep.subr.bf16.mxu0 0
    %408 = vmatpush2.bf16.msra.mxu0 0
    %409 = vmatprep.subr.bf16.mxu0 0
    %410 = vmatpush2.bf16.msra.mxu0 0
    %411 = vmatprep.subr.bf16.mxu0 0
    %412 = vmatpush2.bf16.msra.mxu0 0
    %413 = vmatprep.subr.bf16.mxu0 0
    %414 = vmatpush2.bf16.msra.mxu0 0
    %415 = vmatprep.mubr.bf16.mxu0 0
    %416 = vmatmul.mubr.bf16.gmra.mxu0 %v318
    %v417 = vpop.f32.mrf.mxu0
    %v418 = vadd.f32 0.0, %v417
    %v419 = vpop.f32.mrf.mxu0
    %v420 = vpop.f32.mrf.mxu0
    %v421 = vpop.f32.mrf.mxu0
    %422 = vdwg.mxu0
    %v423 = vld [vmem:[%s3] sm:$0x1]
    %v425 = vlaneseq
    %v426 = vshrl.u32 %v425, 7
    %v427 = vsub.s32 0, %v426
    %v428 = vrot.slane %v423, %v427
    %v430 = vmul.f32 %v418, %v428
    %v431 = vld [vmem:[%s4] sm:$0x1]
    %v433 = vlaneseq
    %v434 = vshrl.u32 %v433, 7
    %v435 = vsub.s32 0, %v434
    %v436 = vrot.slane %v431, %v435
    %v438 = vadd.f32 %v430, %v436
    %v439 = vmax.f32 %v438, 0.0
    %v440 = vpack.c.bf16 %v439, %v439
    %v441 = vld [vmem:[#allocation8] sm:$0xf]
    %v442 = vld [vmem:[#allocation8 + $0x4] sm:$0xf]
    %v443 = vld [vmem:[#allocation8 + $0x8] sm:$0xf]
    %v444 = vld [vmem:[#allocation8 + $0xc] sm:$0xf]
    %v445 = vld [vmem:[#allocation8 + $0x10] sm:$0xf]
    %v446 = vld [vmem:[#allocation8 + $0x14] sm:$0xf]
    %v447 = vld [vmem:[#allocation8 + $0x18] sm:$0xf]
    %v448 = vld [vmem:[#allocation8 + $0x1c] sm:$0xf]
    %v449 = vld [vmem:[#allocation8 + $0x20] sm:$0xf]
    %v450 = vld [vmem:[#allocation8 + $0x24] sm:$0xf]
    %v451 = vld [vmem:[#allocation8 + $0x28] sm:$0xf]
    %v452 = vld [vmem:[#allocation8 + $0x2c] sm:$0xf]
    %v453 = vld [vmem:[#allocation8 + $0x30] sm:$0xf]
    %v454 = vld [vmem:[#allocation8 + $0x34] sm:$0xf]
    %v455 = vld [vmem:[#allocation8 + $0x38] sm:$0xf]
    %v456 = vld [vmem:[#allocation8 + $0x3c] sm:$0xf]
    %v473 = vunpack.c.l.b16 %v441
    %v474 = vunpack.c.l.b16 %v442
    %v475 = vunpack.c.l.b16 %v443
    %v476 = vunpack.c.l.b16 %v444
    %v477 = vunpack.c.l.b16 %v445
    %v478 = vunpack.c.l.b16 %v446
    %v479 = vunpack.c.l.b16 %v447
    %v480 = vunpack.c.l.b16 %v448
    %v481 = vunpack.c.l.b16 %v449
    %v482 = vunpack.c.l.b16 %v450
    %v483 = vunpack.c.l.b16 %v451
    %v484 = vunpack.c.l.b16 %v452
    %v485 = vunpack.c.l.b16 %v453
    %v486 = vunpack.c.l.b16 %v454
    %v487 = vunpack.c.l.b16 %v455
    %v488 = vunpack.c.l.b16 %v456
    %v489 = vpack.c.b16 %v474, %v473
    %v490 = vpack.c.b16 %v476, %v475
    %v491 = vpack.c.b16 %v478, %v477
    %v492 = vpack.c.b16 %v480, %v479
    %v493 = vpack.c.b16 %v482, %v481
    %v494 = vpack.c.b16 %v484, %v483
    %v495 = vpack.c.b16 %v486, %v485
    %v496 = vpack.c.b16 %v488, %v487
    %505 = vmatprep.subr.bf16.mxu0 0
    %506 = vmatpush1.bf16.msra.mxu0 %v496
    %507 = vmatprep.subr.bf16.mxu0 0
    %508 = vmatpush1.bf16.msra.mxu0 %v495
    %509 = vmatprep.subr.bf16.mxu0 0
    %510 = vmatpush1.bf16.msra.mxu0 %v494
    %511 = vmatprep.subr.bf16.mxu0 0
    %512 = vmatpush1.bf16.msra.mxu0 %v493
    %513 = vmatprep.subr.bf16.mxu0 0
    %514 = vmatpush1.bf16.msra.mxu0 %v492
    %515 = vmatprep.subr.bf16.mxu0 0
    %516 = vmatpush1.bf16.msra.mxu0 %v491
    %517 = vmatprep.subr.bf16.mxu0 0
    %518 = vmatpush1.bf16.msra.mxu0 %v490
    %519 = vmatprep.subr.bf16.mxu0 0
    %520 = vmatpush1.bf16.msra.mxu0 %v489
    %521 = vmatprep.subr.bf16.mxu0 0
    %522 = vmatpush2.bf16.msra.mxu0 0
    %523 = vmatprep.subr.bf16.mxu0 0
    %524 = vmatpush2.bf16.msra.mxu0 0
    %525 = vmatprep.subr.bf16.mxu0 0
    %526 = vmatpush2.bf16.msra.mxu0 0
    %527 = vmatprep.subr.bf16.mxu0 0
    %528 = vmatpush2.bf16.msra.mxu0 0
    %529 = vmatprep.subr.bf16.mxu0 0
    %530 = vmatpush2.bf16.msra.mxu0 0
    %531 = vmatprep.subr.bf16.mxu0 0
    %532 = vmatpush2.bf16.msra.mxu0 0
    %533 = vmatprep.subr.bf16.mxu0 0
    %534 = vmatpush2.bf16.msra.mxu0 0
    %535 = vmatprep.subr.bf16.mxu0 0
    %536 = vmatpush2.bf16.msra.mxu0 0
    %537 = vmatprep.mubr.bf16.mxu0 0
    %538 = vmatmul.mubr.bf16.gmra.mxu0 %v440
    %v539 = vpop.f32.mrf.mxu0
    %v540 = vadd.f32 0.0, %v539
    %v541 = vpop.f32.mrf.mxu0
    %v542 = vpop.f32.mrf.mxu0
    %v543 = vpop.f32.mrf.mxu0
    %544 = vdwg.mxu0
    %v545 = vld [vmem:[%s6] sm:$0x1]
    %v547 = vlaneseq
    %v548 = vshrl.u32 %v547, 7
    %v549 = vsub.s32 0, %v548
    %v550 = vrot.slane %v545, %v549
    %v552 = vmul.f32 %v540, %v550
    %v553 = vld [vmem:[%s7] sm:$0x1]
    %v555 = vlaneseq
    %v556 = vshrl.u32 %v555, 7
    %v557 = vsub.s32 0, %v556
    %v558 = vrot.slane %v553, %v557
    %v560 = vadd.f32 %v552, %v558
    %v561 = vmax.f32 %v560, 0.0
    %v562 = vpack.c.bf16 %v561, %v561
    %v563 = vld [vmem:[#allocation10] sm:$0xf]
    %v564 = vld [vmem:[#allocation10 + $0x4] sm:$0xf]
    %v565 = vld [vmem:[#allocation10 + $0x8] sm:$0xf]
    %v566 = vld [vmem:[#allocation10 + $0xc] sm:$0xf]
    %v567 = vld [vmem:[#allocation10 + $0x10] sm:$0xf]
    %v568 = vld [vmem:[#allocation10 + $0x14] sm:$0xf]
    %v569 = vld [vmem:[#allocation10 + $0x18] sm:$0xf]
    %v570 = vld [vmem:[#allocation10 + $0x1c] sm:$0xf]
    %v571 = vld [vmem:[#allocation10 + $0x20] sm:$0xf]
    %v572 = vld [vmem:[#allocation10 + $0x24] sm:$0xf]
    %v573 = vld [vmem:[#allocation10 + $0x28] sm:$0xf]
    %v574 = vld [vmem:[#allocation10 + $0x2c] sm:$0xf]
    %v575 = vld [vmem:[#allocation10 + $0x30] sm:$0xf]
    %v576 = vld [vmem:[#allocation10 + $0x34] sm:$0xf]
    %v577 = vld [vmem:[#allocation10 + $0x38] sm:$0xf]
    %v578 = vld [vmem:[#allocation10 + $0x3c] sm:$0xf]
    %v579 = vld [vmem:[%s9] sm:$0x1]
    %v581 = vlaneseq
    %v582 = vshrl.u32 %v581, 7
    %v583 = vsub.s32 0, %v582
    %v584 = vrot.slane %v579, %v583
    %v602 = vunpack.c.l.b16 %v563
    %v603 = vunpack.c.l.b16 %v564
    %v604 = vunpack.c.l.b16 %v565
    %v605 = vunpack.c.l.b16 %v566
    %v606 = vunpack.c.l.b16 %v567
    %v607 = vunpack.c.l.b16 %v568
    %v608 = vunpack.c.l.b16 %v569
    %v609 = vunpack.c.l.b16 %v570
    %v610 = vunpack.c.l.b16 %v571
    %v611 = vunpack.c.l.b16 %v572
    %v612 = vunpack.c.l.b16 %v573
    %v613 = vunpack.c.l.b16 %v574
    %v614 = vunpack.c.l.b16 %v575
    %v615 = vunpack.c.l.b16 %v576
    %v616 = vunpack.c.l.b16 %v577
    %v617 = vunpack.c.l.b16 %v578
    %v618 = vpack.c.b16 %v603, %v602
    %v619 = vpack.c.b16 %v605, %v604
    %v620 = vpack.c.b16 %v607, %v606
    %v621 = vpack.c.b16 %v609, %v608
    %v622 = vpack.c.b16 %v611, %v610
    %v623 = vpack.c.b16 %v613, %v612
    %v624 = vpack.c.b16 %v615, %v614
    %v625 = vpack.c.b16 %v617, %v616
    %634 = vmatprep.subr.bf16.mxu0 0
    %635 = vmatpush1.bf16.msra.mxu0 %v625
    %636 = vmatprep.subr.bf16.mxu0 0
    %637 = vmatpush1.bf16.msra.mxu0 %v624
    %638 = vmatprep.subr.bf16.mxu0 0
    %639 = vmatpush1.bf16.msra.mxu0 %v623
    %640 = vmatprep.subr.bf16.mxu0 0
    %641 = vmatpush1.bf16.msra.mxu0 %v622
    %642 = vmatprep.subr.bf16.mxu0 0
    %643 = vmatpush1.bf16.msra.mxu0 %v621
    %644 = vmatprep.subr.bf16.mxu0 0
    %645 = vmatpush1.bf16.msra.mxu0 %v620
    %646 = vmatprep.subr.bf16.mxu0 0
    %647 = vmatpush1.bf16.msra.mxu0 %v619
    %648 = vmatprep.subr.bf16.mxu0 0
    %649 = vmatpush1.bf16.msra.mxu0 %v618
    %650 = vmatprep.subr.bf16.mxu0 0
    %651 = vmatpush2.bf16.msra.mxu0 0
    %652 = vmatprep.subr.bf16.mxu0 0
    %653 = vmatpush2.bf16.msra.mxu0 0
    %654 = vmatprep.subr.bf16.mxu0 0
    %655 = vmatpush2.bf16.msra.mxu0 0
    %656 = vmatprep.subr.bf16.mxu0 0
    %657 = vmatpush2.bf16.msra.mxu0 0
    %658 = vmatprep.subr.bf16.mxu0 0
    %659 = vmatpush2.bf16.msra.mxu0 0
    %660 = vmatprep.subr.bf16.mxu0 0
    %661 = vmatpush2.bf16.msra.mxu0 0
    %662 = vmatprep.subr.bf16.mxu0 0
    %663 = vmatpush2.bf16.msra.mxu0 0
    %664 = vmatprep.subr.bf16.mxu0 0
    %665 = vmatpush2.bf16.msra.mxu0 0
    %666 = vmatprep.mubr.bf16.mxu0 0
    %667 = vmatmul.mubr.bf16.gmra.mxu0 %v562
    %v668 = vpop.f32.mrf.mxu0
    %v669 = vadd.f32 %v584, %v668
    %v670 = vpop.f32.mrf.mxu0
    %v671 = vpop.f32.mrf.mxu0
    %v672 = vpop.f32.mrf.mxu0
    %673 = vdwg.mxu0
    %674 = vst [vmem:[#allocation11] sm:$0xff] %v669
    // Predicated region
    $region62: #{tpu_custom_call.1} parent=1 // pred_check
      _
    $region63: #{tpu_custom_call.1} parent=1 // pred_check_branch
      %676 = sbr.rel (0) target = $region65
    $region64: #{tpu_custom_call.1} parent=1 // pred_region
      %s678 = ssub.s32 128, 128
      %679 = vsyncadd [#allocation4], %s678
      %s681 = sshll.u32 [#allocation11], 4
      %s682 = int_to_ptr.vmem [resolvable:$true] %s681
      %684 = dma.vmem_to_hbm [thread:$0]  %s682, 128, %s10, [#allocation4]
    $region65: #{tpu_custom_call.1} parent=1 // pred_fallthru
      _
    // Predicated region
    $region66: #{tpu_custom_call.1} parent=1 // pred_check
      _
    $region67: #{tpu_custom_call.1} parent=1 // pred_check_branch
      %686 = sbr.rel (0) target = $region69
    $region68: #{tpu_custom_call.1} parent=1 // pred_region
      %687 = dma.done [#allocation4], 128
    $region69: #{tpu_custom_call.1} parent=1 // pred_fallthru
      _
    %688 = vsyncpa [#allocation3], 1
    %689 = vsyncpa [#allocation6], 1
    %690 = vsyncpa [#allocation9], 1
    %691 = vsyncpa [#allocation4], 1

</llo_original>
